<compile_context>
chip_gen: v6e
topology: v6e:2x2x1
jax: 0.10.0
libtpu: 0.0.40
codegen_flags: <defaults>
</compile_context>

<pallas_src>
from functools import partial

import jax
import jax.numpy as jnp
from jax.experimental import pallas as pl
from jax.experimental.pallas import tpu as pltpu


def _stream_conv2d_kernel(x_ref, cache_ref, w_ref, o_ref, nc_ref, pad_ref, xcol_ref):
    """Single grid step over the whole (small) batch.

    x_ref:     [B, Cin, 1, F]          current streamed frame (native NCHW)
    cache_ref: [B, Cin, kT-1, F]       previous kT-1 frames
    w_ref:     [Cout, K+1]             folded weight, K = kT*kF*Cin in (kf, t, c) order;
                                       column K holds the bias.
    o_ref:     [B, Cout, 1, F_out]     conv output
    nc_ref:    [B, Cin, kT-1, F]       updated cache (aliased over cache's HBM buffer)
    pad_ref:   VMEM [kT*Cin, B*(F+2*F_pad)]  zero-padded staging slab
    xcol_ref:  VMEM [K+1, B*F_out]     im2col patch matrix (+ ones row for the bias)
    """
    B, Cin, _, F = x_ref.shape
    kTm1 = cache_ref.shape[2]
    kT = kTm1 + 1
    Cout, K1 = w_ref.shape
    K = K1 - 1
    F_out = o_ref.shape[3]
    kF = K // (kT * Cin)
    Fp = pad_ref.shape[1] // B          # F + 2*F_pad
    F_pad = (Fp - F) // 2

    # ---- streaming cache update: new_cache = concat(cache, x, axis=T)[:, :, 1:, :] ----
    if kTm1 >= 2:
        nc_ref[:, :, : kTm1 - 1, :] = cache_ref[:, :, 1:, :]
    nc_ref[:, :, kTm1 - 1:, :] = x_ref[...].astype(nc_ref.dtype)

    # ---- im2col staging: row block t holds inp[:, :, t, :] with F_pad zero columns on
    # each side of every batch's F frequency columns (zeros supply the conv padding).
    if F_pad > 0:
        pad_ref[...] = jnp.zeros_like(pad_ref)
    for b in range(B):
        for t in range(kT):
            row = cache_ref[b, :, t, :] if t < kTm1 else x_ref[b, :, 0, :]   # [Cin, F]
            pad_ref[t * Cin:(t + 1) * Cin,
                    b * Fp + F_pad: b * Fp + F_pad + F] = row.astype(pad_ref.dtype)

    # ---- every frequency tap is one full-block copy out of the staging slab (no masked
    # or variable-width stores; every element of xcol is written, so no zero fill).
    for kf in range(kF):
        for b in range(B):
            xcol_ref[kf * kT * Cin:(kf + 1) * kT * Cin,
                     b * F_out:(b + 1) * F_out] = (
                pad_ref[:, b * Fp + kf: b * Fp + kf + F_out])
    # Ones row pairing with the bias column of w_ref.
    xcol_ref[K:K + 1, :] = jnp.ones((1, xcol_ref.shape[1]), dtype=xcol_ref.dtype)

    # ---- one MXU contraction over all taps, channels and the folded bias ----
    res = jnp.dot(w_ref[...], xcol_ref[...], preferred_element_type=jnp.float32)
    for b in range(B):
        o_ref[b, :, 0, :] = res[:, b * F_out:(b + 1) * F_out].astype(o_ref.dtype)


@partial(jax.jit, static_argnames=("F_pad",), donate_argnames=("cache",))
def stream_conv2d(x, cache, weight, bias, *, F_pad):
    """JAX/Pallas equivalent of StreamConv2d.forward.

    x:      [B, Cin, 1, F]        (NCHW, like PyTorch)
    cache:  [B, Cin, kT-1, F]     (donated; its HBM buffer is reused for new_cache)
    weight: [Cout, Cin, kT, kF]   (PyTorch nn.Conv2d OIHW layout)
    bias:   [Cout]

    Returns (out [B, Cout, 1, F_out], new_cache [B, Cin, kT-1, F]).
    """
    B, Cin, _, F = x.shape
    Cout, _, kT, kF = weight.shape
    F_out = F + 2 * F_pad - kF + 1      # stride=1, dilation=1
    K = kT * kF * Cin
    Fp = F + 2 * F_pad

    # Parameter fold (constant per deployment, hoisted/constant-folded under jit):
    # W_aug[o, (kf*kT + t)*Cin + c] = weight[o, c, t, kf];  W_aug[o, K] = bias[o].
    w_col = jnp.transpose(weight, (0, 3, 2, 1)).reshape(Cout, K)
    w_aug = jnp.concatenate([w_col, bias.reshape(Cout, 1)], axis=1).astype(x.dtype)

    itemsize = x.dtype.itemsize
    flops = 2 * Cout * (K + 1) * B * F_out
    # Advisory only; the cache is counted once since new_cache is written in place over
    # the same HBM buffer.
    bytes_accessed = (
        (x.size + cache.size + B * Cout * F_out) * itemsize
        + w_aug.size * w_aug.dtype.itemsize
    )

    out, new_cache = pl.pallas_call(
        _stream_conv2d_kernel,
        grid=(1,),
        in_specs=[
            pl.BlockSpec((B, Cin, 1, F), lambda i: (0, 0, 0, 0)),        # x
            pl.BlockSpec((B, Cin, kT - 1, F), lambda i: (0, 0, 0, 0)),   # cache
            pl.BlockSpec((Cout, K + 1), lambda i: (0, 0)),               # folded weight+bias
        ],
        out_specs=[
            pl.BlockSpec((B, Cout, 1, F_out), lambda i: (0, 0, 0, 0)),   # conv out
            pl.BlockSpec((B, Cin, kT - 1, F), lambda i: (0, 0, 0, 0)),   # new cache
        ],
        out_shape=[
            jax.ShapeDtypeStruct((B, Cout, 1, F_out), x.dtype),
            jax.ShapeDtypeStruct((B, Cin, kT - 1, F), cache.dtype),
        ],
        scratch_shapes=[
            pltpu.VMEM((kT * Cin, B * Fp), x.dtype),       # zero-padded staging slab
            pltpu.VMEM((K + 1, B * F_out), x.dtype),       # im2col matrix (+ ones row)
        ],
        input_output_aliases={1: 1},  # cache (input 1) -> new_cache (output 1), in place
        compiler_params=pltpu.CompilerParams(
            dimension_semantics=("arbitrary",),
        ),
        cost_estimate=pl.CostEstimate(
            flops=flops, transcendentals=0, bytes_accessed=bytes_accessed
        ),
    )(x, cache, w_aug)

    return out, new_cache


if __name__ == "__main__":
    # Module config (deterministic, synthetic): in=4, out=8, kernel=(3,3),
    # stride=1, padding=(0,1) -> T_pad=0 (required), F_pad=1, groups=1, bias=True.
    B, Cin, Cout, F = 2, 4, 8, 16
    kT, kF, F_pad = 3, 3, 1
    F_out = F + 2 * F_pad - kF + 1

    key = jax.random.PRNGKey(0)
    k1, k2, k3, k4 = jax.random.split(key, 4)
    x = jax.random.normal(k1, (B, Cin, 1, F), jnp.float32)
    cache = jax.random.normal(k2, (B, Cin, kT - 1, F), jnp.float32)

    # Deterministic Conv2d-style init (uniform(-1/sqrt(fan_in), 1/sqrt(fan_in))).
    fan_in = Cin * kT * kF
    bound = 1.0 / (fan_in ** 0.5)
    weight = jax.random.uniform(k3, (Cout, Cin, kT, kF), jnp.float32, -bound, bound)
    bias = jax.random.uniform(k4, (Cout,), jnp.float32, -bound, bound)

    # Reference (same semantics as nn.Conv2d forward), computed BEFORE the kernel call
    # since `cache`'s buffer is donated to new_cache.
    inp = jnp.concatenate([cache, x], axis=2)
    ref_out = jax.lax.conv_general_dilated(
        inp, weight, window_strides=(1, 1),
        padding=((0, 0), (F_pad, F_pad)),
        dimension_numbers=("NCHW", "OIHW", "NCHW"),
    ) + bias[None, :, None, None]
    ref_cache = inp[:, :, 1:]
    jax.block_until_ready((ref_out, ref_cache))

    out, new_cache = stream_conv2d(x, cache, weight, bias, F_pad=F_pad)
    jax.block_until_ready((out, new_cache))

    assert out.shape == (B, Cout, 1, F_out), out.shape
    assert new_cache.shape == (B, Cin, kT - 1, F), new_cache.shape
    assert jnp.allclose(out, ref_out, atol=1e-4, rtol=1e-4), float(jnp.abs(out - ref_out).max())
    assert jnp.allclose(new_cache, ref_cache)

    print("KERNEL_OK")
</pallas_src>

<mosaic_0001>
module attributes {stable_mosaic.version = 11 : i64} {
  func.func @_stream_conv2d_kernel(%arg0: i32, %arg1: memref<2x4x1x16xf32, #tpu.memory_space<vmem>>, %arg2: memref<2x4x2x16xf32, #tpu.memory_space<vmem>>, %arg3: memref<8x37xf32, #tpu.memory_space<vmem>>, %arg4: memref<2x8x1x16xf32, #tpu.memory_space<vmem>>, %arg5: memref<2x4x2x16xf32, #tpu.memory_space<vmem>>, %arg6: memref<12x36xf32, #tpu.memory_space<vmem>>, %arg7: memref<37x32xf32, #tpu.memory_space<vmem>>) attributes {dimension_semantics = [#tpu.dimension_semantics<arbitrary>], iteration_bounds = array<i64: 1>, scalar_prefetch = 0 : i64, scratch_operands = 2 : i64, tpu.core_type = #tpu.core_type<tc>, window_params = [{pipeline_mode = #tpu.pipeline_mode<synchronous>, transform_indices = @transform_0, window_bounds = array<i64: 2, 4, 1, 16>}, {pipeline_mode = #tpu.pipeline_mode<synchronous>, transform_indices = @transform_1, window_bounds = array<i64: 2, 4, 2, 16>}, {pipeline_mode = #tpu.pipeline_mode<synchronous>, transform_indices = @transform_2, window_bounds = array<i64: 8, 37>}, {pipeline_mode = #tpu.pipeline_mode<synchronous>, transform_indices = @transform_3, window_bounds = array<i64: 2, 8, 1, 16>}, {pipeline_mode = #tpu.pipeline_mode<synchronous>, transform_indices = @transform_4, window_bounds = array<i64: 2, 4, 2, 16>}]} {
    %c0 = arith.constant 0 : index
    %c0_0 = arith.constant 0 : index
    %c1 = arith.constant 1 : index
    %c0_1 = arith.constant 0 : index
    %0 = vector.load %arg2[%c0, %c0_0, %c1, %c0_1] : memref<2x4x2x16xf32, #tpu.memory_space<vmem>>, vector<2x4x1x16xf32>
    %c0_2 = arith.constant 0 : index
    %c0_3 = arith.constant 0 : index
    %c0_4 = arith.constant 0 : index
    %c0_5 = arith.constant 0 : index
    %1 = vector.load %arg5[%c0_2, %c0_3, %c0_4, %c0_5] : memref<2x4x2x16xf32, #tpu.memory_space<vmem>>, vector<2x4x1x16xf32>
    tpu.vector_store %arg5[%c0_2, %c0_3, %c0_4, %c0_5], %0 {strides = array<i32>} : memref<2x4x2x16xf32, #tpu.memory_space<vmem>>, vector<2x4x1x16xf32>,
    %c0_6 = arith.constant 0 : index
    %c0_7 = arith.constant 0 : index
    %c0_8 = arith.constant 0 : index
    %c0_9 = arith.constant 0 : index
    %2 = vector.load %arg1[%c0_6, %c0_7, %c0_8, %c0_9] : memref<2x4x1x16xf32, #tpu.memory_space<vmem>>, vector<2x4x1x16xf32>
    %c0_10 = arith.constant 0 : index
    %c0_11 = arith.constant 0 : index
    %c1_12 = arith.constant 1 : index
    %c0_13 = arith.constant 0 : index
    %3 = vector.load %arg5[%c0_10, %c0_11, %c1_12, %c0_13] : memref<2x4x2x16xf32, #tpu.memory_space<vmem>>, vector<2x4x1x16xf32>
    tpu.vector_store %arg5[%c0_10, %c0_11, %c1_12, %c0_13], %2 {strides = array<i32>} : memref<2x4x2x16xf32, #tpu.memory_space<vmem>>, vector<2x4x1x16xf32>,
    %cst = arith.constant 0.000000e+00 : f32
    %4 = vector.broadcast %cst : f32 to vector<12x36xf32>
    %c0_14 = arith.constant 0 : index
    %c0_15 = arith.constant 0 : index
    %5 = vector.load %arg6[%c0_14, %c0_15] : memref<12x36xf32, #tpu.memory_space<vmem>>, vector<12x36xf32>
    tpu.vector_store %arg6[%c0_14, %c0_15], %4 {strides = array<i32>} : memref<12x36xf32, #tpu.memory_space<vmem>>, vector<12x36xf32>,
    %c0_16 = arith.constant 0 : index
    %c0_17 = arith.constant 0 : index
    %c0_18 = arith.constant 0 : index
    %c0_19 = arith.constant 0 : index
    %6 = vector.load %arg2[%c0_16, %c0_17, %c0_18, %c0_19] : memref<2x4x2x16xf32, #tpu.memory_space<vmem>>, vector<1x4x1x16xf32>
    %7 = vector.shape_cast %6 : vector<1x4x1x16xf32> to vector<4x16xf32>
    %c0_20 = arith.constant 0 : index
    %c1_21 = arith.constant 1 : index
    %8 = vector.load %arg6[%c0_20, %c1_21] : memref<12x36xf32, #tpu.memory_space<vmem>>, vector<4x16xf32>
    tpu.vector_store %arg6[%c0_20, %c1_21], %7 {strides = array<i32>} : memref<12x36xf32, #tpu.memory_space<vmem>>, vector<4x16xf32>,
    %c0_22 = arith.constant 0 : index
    %c0_23 = arith.constant 0 : index
    %c1_24 = arith.constant 1 : index
    %c0_25 = arith.constant 0 : index
    %9 = vector.load %arg2[%c0_22, %c0_23, %c1_24, %c0_25] : memref<2x4x2x16xf32, #tpu.memory_space<vmem>>, vector<1x4x1x16xf32>
    %10 = vector.shape_cast %9 : vector<1x4x1x16xf32> to vector<4x16xf32>
    %c4 = arith.constant 4 : index
    %c1_26 = arith.constant 1 : index
    %11 = vector.load %arg6[%c4, %c1_26] : memref<12x36xf32, #tpu.memory_space<vmem>>, vector<4x16xf32>
    tpu.vector_store %arg6[%c4, %c1_26], %10 {strides = array<i32>} : memref<12x36xf32, #tpu.memory_space<vmem>>, vector<4x16xf32>,
    %c0_27 = arith.constant 0 : index
    %c0_28 = arith.constant 0 : index
    %c0_29 = arith.constant 0 : index
    %c0_30 = arith.constant 0 : index
    %12 = vector.load %arg1[%c0_27, %c0_28, %c0_29, %c0_30] : memref<2x4x1x16xf32, #tpu.memory_space<vmem>>, vector<1x4x1x16xf32>
    %13 = vector.shape_cast %12 : vector<1x4x1x16xf32> to vector<4x16xf32>
    %c8 = arith.constant 8 : index
    %c1_31 = arith.constant 1 : index
    %14 = vector.load %arg6[%c8, %c1_31] : memref<12x36xf32, #tpu.memory_space<vmem>>, vector<4x16xf32>
    tpu.vector_store %arg6[%c8, %c1_31], %13 {strides = array<i32>} : memref<12x36xf32, #tpu.memory_space<vmem>>, vector<4x16xf32>,
    %c1_32 = arith.constant 1 : index
    %c0_33 = arith.constant 0 : index
    %c0_34 = arith.constant 0 : index
    %c0_35 = arith.constant 0 : index
    %15 = vector.load %arg2[%c1_32, %c0_33, %c0_34, %c0_35] : memref<2x4x2x16xf32, #tpu.memory_space<vmem>>, vector<1x4x1x16xf32>
    %16 = vector.shape_cast %15 : vector<1x4x1x16xf32> to vector<4x16xf32>
    %c0_36 = arith.constant 0 : index
    %c19 = arith.constant 19 : index
    %17 = vector.load %arg6[%c0_36, %c19] : memref<12x36xf32, #tpu.memory_space<vmem>>, vector<4x16xf32>
    tpu.vector_store %arg6[%c0_36, %c19], %16 {strides = array<i32>} : memref<12x36xf32, #tpu.memory_space<vmem>>, vector<4x16xf32>,
    %c1_37 = arith.constant 1 : index
    %c0_38 = arith.constant 0 : index
    %c1_39 = arith.constant 1 : index
    %c0_40 = arith.constant 0 : index
    %18 = vector.load %arg2[%c1_37, %c0_38, %c1_39, %c0_40] : memref<2x4x2x16xf32, #tpu.memory_space<vmem>>, vector<1x4x1x16xf32>
    %19 = vector.shape_cast %18 : vector<1x4x1x16xf32> to vector<4x16xf32>
    %c4_41 = arith.constant 4 : index
    %c19_42 = arith.constant 19 : index
    %20 = vector.load %arg6[%c4_41, %c19_42] : memref<12x36xf32, #tpu.memory_space<vmem>>, vector<4x16xf32>
    tpu.vector_store %arg6[%c4_41, %c19_42], %19 {strides = array<i32>} : memref<12x36xf32, #tpu.memory_space<vmem>>, vector<4x16xf32>,
    %c1_43 = arith.constant 1 : index
    %c0_44 = arith.constant 0 : index
    %c0_45 = arith.constant 0 : index
    %c0_46 = arith.constant 0 : index
    %21 = vector.load %arg1[%c1_43, %c0_44, %c0_45, %c0_46] : memref<2x4x1x16xf32, #tpu.memory_space<vmem>>, vector<1x4x1x16xf32>
    %22 = vector.shape_cast %21 : vector<1x4x1x16xf32> to vector<4x16xf32>
    %c8_47 = arith.constant 8 : index
    %c19_48 = arith.constant 19 : index
    %23 = vector.load %arg6[%c8_47, %c19_48] : memref<12x36xf32, #tpu.memory_space<vmem>>, vector<4x16xf32>
    tpu.vector_store %arg6[%c8_47, %c19_48], %22 {strides = array<i32>} : memref<12x36xf32, #tpu.memory_space<vmem>>, vector<4x16xf32>,
    %c0_49 = arith.constant 0 : index
    %c0_50 = arith.constant 0 : index
    %24 = vector.load %arg6[%c0_49, %c0_50] : memref<12x36xf32, #tpu.memory_space<vmem>>, vector<12x16xf32>
    %c0_51 = arith.constant 0 : index
    %c0_52 = arith.constant 0 : index
    %25 = vector.load %arg7[%c0_51, %c0_52] : memref<37x32xf32, #tpu.memory_space<vmem>>, vector<12x16xf32>
    tpu.vector_store %arg7[%c0_51, %c0_52], %24 {strides = array<i32>} : memref<37x32xf32, #tpu.memory_space<vmem>>, vector<12x16xf32>,
    %c0_53 = arith.constant 0 : index
    %c18 = arith.constant 18 : index
    %26 = vector.load %arg6[%c0_53, %c18] : memref<12x36xf32, #tpu.memory_space<vmem>>, vector<12x16xf32>
    %c0_54 = arith.constant 0 : index
    %c16 = arith.constant 16 : index
    %27 = vector.load %arg7[%c0_54, %c16] : memref<37x32xf32, #tpu.memory_space<vmem>>, vector<12x16xf32>
    tpu.vector_store %arg7[%c0_54, %c16], %26 {strides = array<i32>} : memref<37x32xf32, #tpu.memory_space<vmem>>, vector<12x16xf32>,
    %c0_55 = arith.constant 0 : index
    %c1_56 = arith.constant 1 : index
    %28 = vector.load %arg6[%c0_55, %c1_56] : memref<12x36xf32, #tpu.memory_space<vmem>>, vector<12x16xf32>
    %c12 = arith.constant 12 : index
    %c0_57 = arith.constant 0 : index
    %29 = vector.load %arg7[%c12, %c0_57] : memref<37x32xf32, #tpu.memory_space<vmem>>, vector<12x16xf32>
    tpu.vector_store %arg7[%c12, %c0_57], %28 {strides = array<i32>} : memref<37x32xf32, #tpu.memory_space<vmem>>, vector<12x16xf32>,
    %c0_58 = arith.constant 0 : index
    %c19_59 = arith.constant 19 : index
    %30 = vector.load %arg6[%c0_58, %c19_59] : memref<12x36xf32, #tpu.memory_space<vmem>>, vector<12x16xf32>
    %c12_60 = arith.constant 12 : index
    %c16_61 = arith.constant 16 : index
    %31 = vector.load %arg7[%c12_60, %c16_61] : memref<37x32xf32, #tpu.memory_space<vmem>>, vector<12x16xf32>
    tpu.vector_store %arg7[%c12_60, %c16_61], %30 {strides = array<i32>} : memref<37x32xf32, #tpu.memory_space<vmem>>, vector<12x16xf32>,
    %c0_62 = arith.constant 0 : index
    %c2 = arith.constant 2 : index
    %32 = vector.load %arg6[%c0_62, %c2] : memref<12x36xf32, #tpu.memory_space<vmem>>, vector<12x16xf32>
    %c24 = arith.constant 24 : index
    %c0_63 = arith.constant 0 : index
    %33 = vector.load %arg7[%c24, %c0_63] : memref<37x32xf32, #tpu.memory_space<vmem>>, vector<12x16xf32>
    tpu.vector_store %arg7[%c24, %c0_63], %32 {strides = array<i32>} : memref<37x32xf32, #tpu.memory_space<vmem>>, vector<12x16xf32>,
    %c0_64 = arith.constant 0 : index
    %c20 = arith.constant 20 : index
    %34 = vector.load %arg6[%c0_64, %c20] : memref<12x36xf32, #tpu.memory_space<vmem>>, vector<12x16xf32>
    %c24_65 = arith.constant 24 : index
    %c16_66 = arith.constant 16 : index
    %35 = vector.load %arg7[%c24_65, %c16_66] : memref<37x32xf32, #tpu.memory_space<vmem>>, vector<12x16xf32>
    tpu.vector_store %arg7[%c24_65, %c16_66], %34 {strides = array<i32>} : memref<37x32xf32, #tpu.memory_space<vmem>>, vector<12x16xf32>,
    %cst_67 = arith.constant 1.000000e+00 : f32
    %36 = vector.broadcast %cst_67 : f32 to vector<1x32xf32>
    %c36 = arith.constant 36 : index
    %c0_68 = arith.constant 0 : index
    %37 = vector.load %arg7[%c36, %c0_68] : memref<37x32xf32, #tpu.memory_space<vmem>>, vector<1x32xf32>
    tpu.vector_store %arg7[%c36, %c0_68], %36 {strides = array<i32>} : memref<37x32xf32, #tpu.memory_space<vmem>>, vector<1x32xf32>,
    %c0_69 = arith.constant 0 : index
    %c0_70 = arith.constant 0 : index
    %38 = vector.load %arg3[%c0_69, %c0_70] : memref<8x37xf32, #tpu.memory_space<vmem>>, vector<8x37xf32>
    %c0_71 = arith.constant 0 : index
    %c0_72 = arith.constant 0 : index
    %39 = vector.load %arg7[%c0_71, %c0_72] : memref<37x32xf32, #tpu.memory_space<vmem>>, vector<37x32xf32>
    %cst_73 = arith.constant dense<0.000000e+00> : vector<8x32xf32>
    %40 = tpu.matmul %38, %39, %cst_73 {dimension_numbers = #tpu.dot_dimension_numbers<[1], [0], [0], [1], [0, 0, 1, 1], [], []>} : vector<8x37xf32>, vector<37x32xf32>, vector<8x32xf32> -> vector<8x32xf32>
    %41 = vector.extract_strided_slice %40 {offsets = [0, 0], sizes = [8, 16], strides = [1, 1]} : vector<8x32xf32> to vector<8x16xf32>
    %c0_74 = arith.constant 0 : index
    %c0_75 = arith.constant 0 : index
    %c0_76 = arith.constant 0 : index
    %c0_77 = arith.constant 0 : index
    %42 = vector.load %arg4[%c0_74, %c0_75, %c0_76, %c0_77] : memref<2x8x1x16xf32, #tpu.memory_space<vmem>>, vector<1x8x1x16xf32>
    %43 = vector.shape_cast %42 : vector<1x8x1x16xf32> to vector<8x16xf32>
    %44 = vector.shape_cast %41 : vector<8x16xf32> to vector<1x8x1x16xf32>
    tpu.vector_store %arg4[%c0_74, %c0_75, %c0_76, %c0_77], %44 {strides = array<i32>} : memref<2x8x1x16xf32, #tpu.memory_space<vmem>>, vector<1x8x1x16xf32>,
    %45 = vector.extract_strided_slice %40 {offsets = [0, 16], sizes = [8, 16], strides = [1, 1]} : vector<8x32xf32> to vector<8x16xf32>
    %c1_78 = arith.constant 1 : index
    %c0_79 = arith.constant 0 : index
    %c0_80 = arith.constant 0 : index
    %c0_81 = arith.constant 0 : index
    %46 = vector.load %arg4[%c1_78, %c0_79, %c0_80, %c0_81] : memref<2x8x1x16xf32, #tpu.memory_space<vmem>>, vector<1x8x1x16xf32>
    %47 = vector.shape_cast %46 : vector<1x8x1x16xf32> to vector<8x16xf32>
    %48 = vector.shape_cast %45 : vector<8x16xf32> to vector<1x8x1x16xf32>
    tpu.vector_store %arg4[%c1_78, %c0_79, %c0_80, %c0_81], %48 {strides = array<i32>} : memref<2x8x1x16xf32, #tpu.memory_space<vmem>>, vector<1x8x1x16xf32>,
    return
  }
  func.func @transform_0(%arg0: i32) -> (i32, i32, i32, i32) {
    %c0_i32 = arith.constant 0 : i32
    %c0_i32_0 = arith.constant 0 : i32
    %c0_i32_1 = arith.constant 0 : i32
    %c0_i32_2 = arith.constant 0 : i32
    %c0_i32_3 = arith.constant 0 : i32
    return %c0_i32, %c0_i32_0, %c0_i32_1, %c0_i32_2 : i32, i32, i32, i32
  }
  func.func @transform_1(%arg0: i32) -> (i32, i32, i32, i32) {
    %c0_i32 = arith.constant 0 : i32
    %c0_i32_0 = arith.constant 0 : i32
    %c0_i32_1 = arith.constant 0 : i32
    %c0_i32_2 = arith.constant 0 : i32
    %c0_i32_3 = arith.constant 0 : i32
    return %c0_i32, %c0_i32_0, %c0_i32_1, %c0_i32_2 : i32, i32, i32, i32
  }
  func.func @transform_2(%arg0: i32) -> (i32, i32) {
    %c0_i32 = arith.constant 0 : i32
    %c0_i32_0 = arith.constant 0 : i32
    %c0_i32_1 = arith.constant 0 : i32
    return %c0_i32, %c0_i32_0 : i32, i32
  }
  func.func @transform_3(%arg0: i32) -> (i32, i32, i32, i32) {
    %c0_i32 = arith.constant 0 : i32
    %c0_i32_0 = arith.constant 0 : i32
    %c0_i32_1 = arith.constant 0 : i32
    %c0_i32_2 = arith.constant 0 : i32
    %c0_i32_3 = arith.constant 0 : i32
    return %c0_i32, %c0_i32_0, %c0_i32_1, %c0_i32_2 : i32, i32, i32, i32
  }
  func.func @transform_4(%arg0: i32) -> (i32, i32, i32, i32) {
    %c0_i32 = arith.constant 0 : i32
    %c0_i32_0 = arith.constant 0 : i32
    %c0_i32_1 = arith.constant 0 : i32
    %c0_i32_2 = arith.constant 0 : i32
    %c0_i32_3 = arith.constant 0 : i32
    return %c0_i32, %c0_i32_0, %c0_i32_1, %c0_i32_2 : i32, i32, i32, i32
  }
}

</mosaic_0001>

<llo_original>
// kernel: stream_conv2d.1
$region0: #{stream_conv2d.1}
  #allocation0 [shape = 'u32[]', space=smem, size = 0x4, offset = 0x4, fixed_abs, tag = 'smem constant byte address 0x4 - core index']
  #allocation1 [shape = 'u32[144,128]{1,0:T(1,128)}', space=vmem, size = 0x12000, scoped, tag = 'internal scratch']
  #allocation2 [shape = 'f32[12,36]{1,0:T(8,128)}', space=vmem, size = 0x2000, scoped, tag = 'scratch operand']
  #allocation3 [shape = 'f32[37,32]{1,0:T(8,128)}', space=vmem, size = 0x5000, scoped, tag = 'scratch operand']
  %s0 = inlined_call_operand.vmem [shape: f32[2,4,1,16], index: 0, kind: input, shape index: {}]
  %s1 = inlined_call_operand.hbm [shape: f32[2,4,2,16], index: 1, kind: input, shape index: {}, may-alias: {1,4}]
  %s2 = inlined_call_operand.vmem [shape: f32[8,37], index: 2, kind: input, shape index: {}]
  %s3 = inlined_call_operand.hbm [shape: f32[2,8,1,16], index: 3, kind: output, shape index: {0}]
  %s4 = inlined_call_operand.hbm [shape: f32[2,4,2,16], index: 4, kind: output, shape index: {1}, may-alias: {1,4}]
  %5 = xla_tuple %s3, %s4
  %s6 = sld [smem:[#allocation0]]
  $region34: #{stream_conv2d.1} parent=0
    _
  %s8 = ssub.s32 1, %s6
  %s9 = scalar_select 0, %s8, %s6
  $region1: #{stream_conv2d.1} parent=0
    #allocation4 [shape = 'u8[8192]{0}', space=vmem, size = 0x2000, scoped, tag = 'input window, operand 1, single buffered']
    #allocation5 [shape = 's32[1]{0}', space=sflag, size = 0x4, scoped, tag = 'scoped memory for stream_conv2d.1']
    #allocation6 [shape = 's32[1]{0}', space=sflag, size = 0x4, scoped, tag = 'scoped memory for stream_conv2d.1']
    #allocation7 [shape = 'u8[8192]{0}', space=vmem, size = 0x2000, scoped, tag = 'output window, operand 0, single buffered']
    #allocation8 [shape = 'u8[8192]{0}', space=vmem, size = 0x2000, scoped, tag = 'output window, operand 1, single buffered']
    #allocation9 [shape = 's32[1]{0}', space=sflag, size = 0x4, scoped, tag = 'scoped memory for stream_conv2d.1']
    %10 = vsyncpa [#allocation5], 0
    %11 = vsyncpa [#allocation6], 0
    %12 = vsyncpa [#allocation9], 0
    // Predicated region
    $region2: #{stream_conv2d.1} parent=1 // pred_check
      _
    $region3: #{stream_conv2d.1} parent=1 // pred_check_branch
      %14 = sbr.rel (0) target = $region5
    $region4: #{stream_conv2d.1} parent=1 // pred_region
      _
    $region5: #{stream_conv2d.1} parent=1 // pred_fallthru
      _
    // Predicated region
    $region6: #{stream_conv2d.1} parent=1 // pred_check
      _
    $region7: #{stream_conv2d.1} parent=1 // pred_check_branch
      %16 = sbr.rel (0) target = $region9
    $region8: #{stream_conv2d.1} parent=1 // pred_region
      %s18 = ssub.s32 256, 256
      %19 = vsyncadd [#allocation5], %s18
      %s20 = sshll.u32 [#allocation4], 4
      %s21 = int_to_ptr.vmem [resolvable:$true] %s20
      %26 = dma.hbm_to_vmem [thread:$0]  %s1, 256, %s21, [#allocation5], 32, 32, 2
    $region9: #{stream_conv2d.1} parent=1 // pred_fallthru
      _
    // Predicated region
    $region10: #{stream_conv2d.1} parent=1 // pred_check
      _
    $region11: #{stream_conv2d.1} parent=1 // pred_check_branch
      %28 = sbr.rel (0) target = $region13
    $region12: #{stream_conv2d.1} parent=1 // pred_region
      _
    $region13: #{stream_conv2d.1} parent=1 // pred_fallthru
      _
    // Predicated region
    $region14: #{stream_conv2d.1} parent=1 // pred_check
      _
    $region15: #{stream_conv2d.1} parent=1 // pred_check_branch
      %30 = sbr.rel (0) target = $region17
    $region16: #{stream_conv2d.1} parent=1 // pred_region
      %31 = dma.done [#allocation5], 256
    $region17: #{stream_conv2d.1} parent=1 // pred_fallthru
      _
    %v32 = vld [vmem:[#allocation4 + $0x1] sm:$0x1]
    %v33 = vld [vmem:[#allocation4 + $0x3] sm:$0x1]
    %v34 = vld [vmem:[#allocation4 + $0x5] sm:$0x1]
    %v35 = vld [vmem:[#allocation4 + $0x7] sm:$0x1]
    %v36 = vld [vmem:[#allocation4 + $0x9] sm:$0x1]
    %v37 = vld [vmem:[#allocation4 + $0xb] sm:$0x1]
    %v38 = vld [vmem:[#allocation4 + $0xd] sm:$0x1]
    %v39 = vld [vmem:[#allocation4 + $0xf] sm:$0x1]
    %vm40 = vcmask 122880
    %41 = vst.msk [vmem:[#allocation8] sm:$0x1] %vm40, %v32
    %42 = vst.msk [vmem:[#allocation8 + $0x2] sm:$0x1] %vm40, %v33
    %43 = vst.msk [vmem:[#allocation8 + $0x4] sm:$0x1] %vm40, %v34
    %44 = vst.msk [vmem:[#allocation8 + $0x6] sm:$0x1] %vm40, %v35
    %45 = vst.msk [vmem:[#allocation8 + $0x8] sm:$0x1] %vm40, %v36
    %46 = vst.msk [vmem:[#allocation8 + $0xa] sm:$0x1] %vm40, %v37
    %47 = vst.msk [vmem:[#allocation8 + $0xc] sm:$0x1] %vm40, %v38
    %48 = vst.msk [vmem:[#allocation8 + $0xe] sm:$0x1] %vm40, %v39
    %v49 = vld [vmem:[%s0] sm:$0x1]
    %v50 = vld [vmem:[%s0 + $0x1] sm:$0x1]
    %v51 = vld [vmem:[%s0 + $0x2] sm:$0x1]
    %v52 = vld [vmem:[%s0 + $0x3] sm:$0x1]
    %v53 = vld [vmem:[%s0 + $0x4] sm:$0x1]
    %v54 = vld [vmem:[%s0 + $0x5] sm:$0x1]
    %v55 = vld [vmem:[%s0 + $0x6] sm:$0x1]
    %v56 = vld [vmem:[%s0 + $0x7] sm:$0x1]
    %57 = vst.msk [vmem:[#allocation8 + $0x1] sm:$0x1] %vm40, %v49
    %58 = vst.msk [vmem:[#allocation8 + $0x3] sm:$0x1] %vm40, %v50
    %59 = vst.msk [vmem:[#allocation8 + $0x5] sm:$0x1] %vm40, %v51
    %60 = vst.msk [vmem:[#allocation8 + $0x7] sm:$0x1] %vm40, %v52
    %61 = vst.msk [vmem:[#allocation8 + $0x9] sm:$0x1] %vm40, %v53
    %62 = vst.msk [vmem:[#allocation8 + $0xb] sm:$0x1] %vm40, %v54
    %63 = vst.msk [vmem:[#allocation8 + $0xd] sm:$0x1] %vm40, %v55
    %64 = vst.msk [vmem:[#allocation8 + $0xf] sm:$0x1] %vm40, %v56
    %vm65 = vcmask 293888
    %66 = vst.msk [vmem:[#allocation2] sm:$0xff] %vm65, 0.0
    %vm67 = vcmask 289792
    %68 = vst.msk [vmem:[#allocation2 + $0x8] sm:$0xf] %vm67, 0.0
    %v69 = vld [vmem:[#allocation4] sm:$0x1]
    %v70 = vld [vmem:[#allocation4 + $0x2] sm:$0x1]
    %v71 = vld [vmem:[#allocation4 + $0x4] sm:$0x1]
    %v72 = vld [vmem:[#allocation4 + $0x6] sm:$0x1]
    %v77 = vrot.slane %v70, 7
    %vm78 = vcmask 1041409
    %v79 = vsel %vm78, %v77, %v69
    %v80 = vrot.slane %v71, 6
    %vm81 = vcmask 1042434
    %v82 = vsel %vm81, %v80, %v79
    %v83 = vrot.slane %v72, 5
    %vm84 = vcmask 1043459
    %v85 = vsel %vm84, %v83, %v82
    %86 = vrot.lane.b32.xlu0 %v85, 1
    %v87 = vpop.permute.xlu0 %86
    %vm89 = vcmask 134152
    %90 = vst.msk [vmem:[#allocation2] sm:$0xf] %vm89, %v87
    %v91 = vld [vmem:[#allocation4 + $0x1] sm:$0x1]
    %v92 = vld [vmem:[#allocation4 + $0x3] sm:$0x1]
    %v93 = vld [vmem:[#allocation4 + $0x5] sm:$0x1]
    %v94 = vld [vmem:[#allocation4 + $0x7] sm:$0x1]
    %v99 = vrot.slane %v92, 7
    %v100 = vsel %vm78, %v99, %v91
    %v101 = vrot.slane %v93, 6
    %v102 = vsel %vm81, %v101, %v100
    %v103 = vrot.slane %v94, 5
    %v104 = vsel %vm84, %v103, %v102
    %105 = vrot.lane.b32.xlu0 %v104, 1
    %v106 = vpop.permute.xlu0 %105
    %108 = vst.msk [vmem:[#allocation2 + $0x4] sm:$0xf] %vm89, %v106
    %v109 = vld [vmem:[%s0] sm:$0x1]
    %v110 = vld [vmem:[%s0 + $0x1] sm:$0x1]
    %v111 = vld [vmem:[%s0 + $0x2] sm:$0x1]
    %v112 = vld [vmem:[%s0 + $0x3] sm:$0x1]
    %v117 = vcombine.low %v109, %v110
    %v118 = vcombine.low %v111, %v112
    %v120 = vunpack.c.l.s4 1966171168
    %v121 = vunpack.c.0.s8 %v120
    %v122 = vlaneseq
    %v123 = vshrl.u32 %v122, 7
    %v124 = vsub.s32 %v121, %v123
    %v125 = vrot.slane %v117, %v124
    %v127 = vunpack.c.l.s4 1966171168
    %v128 = vunpack.c.0.s8 %v127
    %v129 = vlaneseq
    %v130 = vshrl.u32 %v129, 7
    %v131 = vsub.s32 %v128, %v130
    %v132 = vrot.slane %v118, %v131
    %v133 = vcombine.low %v125, %v132
    %v135 = vunpack.c.l.s4 1966171168
    %v136 = vunpack.c.0.s8 %v135
    %v137 = vlaneseq
    %v138 = vshrl.u32 %v137, 7
    %v139 = vsub.s32 %v136, %v138
    %v140 = vrot.slane %v133, %v139
    %141 = vrot.lane.b32.xlu0 %v140, 1
    %v142 = vpop.permute.xlu0 %141
    %144 = vst.msk [vmem:[#allocation2 + $0x8] sm:$0xf] %vm89, %v142
    %s145 = scalar_lea.vmem [#allocation4], 8
    %v146 = vld [vmem:[%s145] sm:$0x1]
    %v147 = vld [vmem:[%s145 + $0x2] sm:$0x1]
    %v148 = vld [vmem:[%s145 + $0x4] sm:$0x1]
    %v149 = vld [vmem:[%s145 + $0x6] sm:$0x1]
    %v154 = vrot.slane %v147, 7
    %v155 = vsel %vm78, %v154, %v146
    %v156 = vrot.slane %v148, 6
    %v157 = vsel %vm81, %v156, %v155
    %v158 = vrot.slane %v149, 5
    %v159 = vsel %vm84, %v158, %v157
    %160 = vrot.lane.b32.xlu0 %v159, 19
    %v161 = vpop.permute.xlu0 %160
    %vm163 = vcmask 281752
    %164 = vst.msk [vmem:[#allocation2] sm:$0xf] %vm163, %v161
    %v165 = vld [vmem:[%s145 + $0x1] sm:$0x1]
    %v166 = vld [vmem:[%s145 + $0x3] sm:$0x1]
    %v167 = vld [vmem:[%s145 + $0x5] sm:$0x1]
    %v168 = vld [vmem:[%s145 + $0x7] sm:$0x1]
    %v173 = vrot.slane %v166, 7
    %v174 = vsel %vm78, %v173, %v165
    %v175 = vrot.slane %v167, 6
    %v176 = vsel %vm81, %v175, %v174
    %v177 = vrot.slane %v168, 5
    %v178 = vsel %vm84, %v177, %v176
    %179 = vrot.lane.b32.xlu0 %v178, 19
    %v180 = vpop.permute.xlu0 %179
    %182 = vst.msk [vmem:[#allocation2 + $0x4] sm:$0xf] %vm163, %v180
    %s183 = scalar_lea.vmem %s0, 4
    %v184 = vld [vmem:[%s183] sm:$0x1]
    %v185 = vld [vmem:[%s183 + $0x1] sm:$0x1]
    %v186 = vld [vmem:[%s183 + $0x2] sm:$0x1]
    %v187 = vld [vmem:[%s183 + $0x3] sm:$0x1]
    %v192 = vcombine.low %v184, %v185
    %v193 = vcombine.low %v186, %v187
    %v195 = vunpack.c.l.s4 1966171168
    %v196 = vunpack.c.0.s8 %v195
    %v197 = vlaneseq
    %v198 = vshrl.u32 %v197, 7
    %v199 = vsub.s32 %v196, %v198
    %v200 = vrot.slane %v192, %v199
    %v202 = vunpack.c.l.s4 1966171168
    %v203 = vunpack.c.0.s8 %v202
    %v204 = vlaneseq
    %v205 = vshrl.u32 %v204, 7
    %v206 = vsub.s32 %v203, %v205
    %v207 = vrot.slane %v193, %v206
    %v208 = vcombine.low %v200, %v207
    %v210 = vunpack.c.l.s4 1966171168
    %v211 = vunpack.c.0.s8 %v210
    %v212 = vlaneseq
    %v213 = vshrl.u32 %v212, 7
    %v214 = vsub.s32 %v211, %v213
    %v215 = vrot.slane %v208, %v214
    %216 = vrot.lane.b32.xlu0 %v215, 19
    %v217 = vpop.permute.xlu0 %216
    %219 = vst.msk [vmem:[#allocation2 + $0x8] sm:$0xf] %vm163, %v217
    %v220 = vld [vmem:[#allocation2] sm:$0xff]
    %v221 = vld [vmem:[#allocation2 + $0x8] sm:$0xf]
    %vm222 = vcmask 130048
    %223 = vst.msk [vmem:[#allocation3] sm:$0xff] %vm222, %v220
    %vm224 = vcmask 125952
    %225 = vst.msk [vmem:[#allocation3 + $0x8] sm:$0xf] %vm224, %v221
    %v226 = vld [vmem:[#allocation2] sm:$0xff]
    %v227 = vld [vmem:[#allocation2 + $0x8] sm:$0xf]
    %230 = vrot.lane.b32.xlu0 %v226, 126
    %v231 = vpop.permute.xlu0 %230
    %232 = vrot.lane.b32.xlu0 %v227, 126
    %v233 = vpop.permute.xlu0 %232
    %vm236 = vcmask 261248
    %237 = vst.msk [vmem:[#allocation3] sm:$0xff] %vm236, %v231
    %vm238 = vcmask 257152
    %239 = vst.msk [vmem:[#allocation3 + $0x8] sm:$0xf] %vm238, %v233
    %v240 = vld [vmem:[#allocation2] sm:$0xff]
    %v241 = vld [vmem:[#allocation2 + $0x8] sm:$0xf]
    %244 = vrot.lane.b32.xlu0 %v240, 127
    %v245 = vpop.permute.xlu0 %244
    %246 = vrot.lane.b32.xlu0 %v241, 127
    %v247 = vpop.permute.xlu0 %246
    %250 = vst.msk [vmem:[#allocation3 + $0xc] sm:$0xff] %vm222, %v245
    %251 = vst.msk [vmem:[#allocation3 + $0x14] sm:$0xf] %vm224, %v247
    %v252 = vld [vmem:[#allocation2] sm:$0xff]
    %v253 = vld [vmem:[#allocation2 + $0x8] sm:$0xf]
    %256 = vrot.lane.b32.xlu0 %v252, 125
    %v257 = vpop.permute.xlu0 %256
    %258 = vrot.lane.b32.xlu0 %v253, 125
    %v259 = vpop.permute.xlu0 %258
    %262 = vst.msk [vmem:[#allocation3 + $0xc] sm:$0xff] %vm236, %v257
    %263 = vst.msk [vmem:[#allocation3 + $0x14] sm:$0xf] %vm238, %v259
    %v264 = vld [vmem:[#allocation2] sm:$0xff]
    %v265 = vld [vmem:[#allocation2 + $0x8] sm:$0xf]
    %268 = vrot.lane.b32.xlu0 %v264, 126
    %v269 = vpop.permute.xlu0 %268
    %270 = vrot.lane.b32.xlu0 %v265, 126
    %v271 = vpop.permute.xlu0 %270
    %274 = vst.msk [vmem:[#allocation3 + $0x18] sm:$0xff] %vm222, %v269
    %275 = vst.msk [vmem:[#allocation3 + $0x20] sm:$0xf] %vm224, %v271
    %v276 = vld [vmem:[#allocation2] sm:$0xff]
    %v277 = vld [vmem:[#allocation2 + $0x8] sm:$0xf]
    %280 = vrot.lane.b32.xlu0 %v276, 124
    %v281 = vpop.permute.xlu0 %280
    %282 = vrot.lane.b32.xlu0 %v277, 124
    %v283 = vpop.permute.xlu0 %282
    %286 = vst.msk [vmem:[#allocation3 + $0x18] sm:$0xff] %vm236, %v281
    %287 = vst.msk [vmem:[#allocation3 + $0x20] sm:$0xf] %vm238, %v283
    %vm288 = vcmask 253952
    %289 = vst.msk [vmem:[#allocation3 + $0x24] sm:$0x1] %vm288, 1.0
    %v290 = vld [vmem:[%s2] sm:$0xff]
    %v291 = vld [vmem:[#allocation3] sm:$0xff]
    %v292 = vld [vmem:[#allocation3 + $0x8] sm:$0xff]
    %v293 = vld [vmem:[#allocation3 + $0x10] sm:$0xff]
    %v294 = vld [vmem:[#allocation3 + $0x18] sm:$0xff]
    %v295 = vld [vmem:[#allocation3 + $0x20] sm:$0x1f]
    %vm296 = vcmask 302080
    %v298 = vsel %vm296, %v290, 0
    %vm300 = vcmask 1044480
    %v302 = vsel %vm300, %v295, 0
    %304 = vmatprep.subr.mxu0 0.0
    %305 = vmatpush1.msra.mxu0 0.0
    %306 = vmatprep.subr.mxu0 0.0
    %307 = vmatpush1.msra.mxu0 0.0
    %308 = vmatprep.subr.mxu0 0.0
    %309 = vmatpush1.msra.mxu0 0.0
    %310 = vmatprep.subr.mxu0 0.0
    %311 = vmatpush1.msra.mxu0 0.0
    %312 = vmatprep.subr.mxu0 0.0
    %313 = vmatpush1.msra.mxu0 0.0
    %314 = vmatprep.subr.mxu0 0.0
    %315 = vmatpush1.msra.mxu0 0.0
    %316 = vmatprep.subr.mxu0 0.0
    %317 = vmatpush1.msra.mxu0 0.0
    %318 = vmatprep.subr.mxu0 0.0
    %319 = vmatpush1.msra.mxu0 0.0
    %320 = vmatprep.subr.mxu0 0.0
    %321 = vmatpush1.msra.mxu0 0.0
    %322 = vmatprep.subr.mxu0 0.0
    %323 = vmatpush1.msra.mxu0 0.0
    %324 = vmatprep.subr.mxu0 0.0
    %325 = vmatpush1.msra.mxu0 0.0
    %326 = vmatprep.subr.mxu0 0.0
    %327 = vmatpush1.msra.mxu0 %v302
    %328 = vmatprep.subr.mxu0 0.0
    %329 = vmatpush1.msra.mxu0 %v294
    %330 = vmatprep.subr.mxu0 0.0
    %331 = vmatpush1.msra.mxu0 %v293
    %332 = vmatprep.subr.mxu0 0.0
    %333 = vmatpush1.msra.mxu0 %v292
    %334 = vmatprep.subr.mxu0 0.0
    %335 = vmatpush1.msra.mxu0 %v291
    %336 = vmatprep.subr.mxu0 0.0
    %337 = vmatpush2.msra.mxu0 0.0
    %338 = vmatprep.subr.mxu0 0.0
    %339 = vmatpush2.msra.mxu0 0.0
    %340 = vmatprep.subr.mxu0 0.0
    %341 = vmatpush2.msra.mxu0 0.0
    %342 = vmatprep.subr.mxu0 0.0
    %343 = vmatpush2.msra.mxu0 0.0
    %344 = vmatprep.subr.mxu0 0.0
    %345 = vmatpush2.msra.mxu0 0.0
    %346 = vmatprep.subr.mxu0 0.0
    %347 = vmatpush2.msra.mxu0 0.0
    %348 = vmatprep.subr.mxu0 0.0
    %349 = vmatpush2.msra.mxu0 0.0
    %350 = vmatprep.subr.mxu0 0.0
    %351 = vmatpush2.msra.mxu0 0.0
    %352 = vmatprep.subr.mxu0 0.0
    %353 = vmatpush2.msra.mxu0 0.0
    %354 = vmatprep.subr.mxu0 0.0
    %355 = vmatpush2.msra.mxu0 0.0
    %356 = vmatprep.subr.mxu0 0.0
    %357 = vmatpush2.msra.mxu0 0.0
    %358 = vmatprep.subr.mxu0 0.0
    %359 = vmatpush2.msra.mxu0 0.0
    %360 = vmatprep.subr.mxu0 0.0
    %361 = vmatpush2.msra.mxu0 0.0
    %362 = vmatprep.subr.mxu0 0.0
    %363 = vmatpush2.msra.mxu0 0.0
    %364 = vmatprep.subr.mxu0 0.0
    %365 = vmatpush2.msra.mxu0 0.0
    %366 = vmatprep.subr.mxu0 0.0
    %367 = vmatpush2.msra.mxu0 0.0
    %368 = vmatprep.mubr.f32.mxu0 0.0
    %369 = vmatmul.mubr.f32.gmra.mxu0 %v298
    %v370 = vpop.f32.mrf.mxu0
    %v371 = vadd.f32 0.0, %v370
    %v372 = vpop.f32.mrf.mxu0
    %373 = vdwg.mxu0
    %v375 = vcombine.high %v371, %v371
    %v377 = vunpack.c.l.s4 1966171168
    %v378 = vunpack.c.0.s8 %v377
    %v379 = vlaneseq
    %v380 = vshrl.u32 %v379, 7
    %v381 = vsub.s32 %v378, %v380
    %v382 = vrot.slane %v371, %v381
    %v384 = vunpack.c.l.s4 1966171168
    %v385 = vunpack.c.0.s8 %v384
    %v386 = vlaneseq
    %v387 = vshrl.u32 %v386, 7
    %v388 = vsub.s32 %v385, %v387
    %v389 = vrot.slane %v375, %v388
    %v390 = vcombine.high %v382, %v382
    %v391 = vcombine.high %v389, %v389
    %v393 = vunpack.c.l.s4 1966171168
    %v394 = vunpack.c.0.s8 %v393
    %v395 = vlaneseq
    %v396 = vshrl.u32 %v395, 7
    %v397 = vsub.s32 %v394, %v396
    %v398 = vrot.slane %v382, %v397
    %v400 = vunpack.c.l.s4 1966171168
    %v401 = vunpack.c.0.s8 %v400
    %v402 = vlaneseq
    %v403 = vshrl.u32 %v402, 7
    %v404 = vsub.s32 %v401, %v403
    %v405 = vrot.slane %v389, %v404
    %v407 = vunpack.c.l.s4 1966171168
    %v408 = vunpack.c.0.s8 %v407
    %v409 = vlaneseq
    %v410 = vshrl.u32 %v409, 7
    %v411 = vsub.s32 %v408, %v410
    %v412 = vrot.slane %v390, %v411
    %v414 = vunpack.c.l.s4 1966171168
    %v415 = vunpack.c.0.s8 %v414
    %v416 = vlaneseq
    %v417 = vshrl.u32 %v416, 7
    %v418 = vsub.s32 %v415, %v417
    %v419 = vrot.slane %v391, %v418
    %v420 = vcombine.high %v398, %v398
    %v421 = vcombine.high %v405, %v405
    %v422 = vcombine.high %v412, %v412
    %v423 = vcombine.high %v419, %v419
    %432 = vst.msk [vmem:[#allocation7] sm:$0x1] %vm40, %v398
    %433 = vst.msk [vmem:[#allocation7 + $0x1] sm:$0x1] %vm40, %v412
    %434 = vst.msk [vmem:[#allocation7 + $0x2] sm:$0x1] %vm40, %v420
    %435 = vst.msk [vmem:[#allocation7 + $0x3] sm:$0x1] %vm40, %v422
    %436 = vst.msk [vmem:[#allocation7 + $0x4] sm:$0x1] %vm40, %v405
    %437 = vst.msk [vmem:[#allocation7 + $0x5] sm:$0x1] %vm40, %v419
    %438 = vst.msk [vmem:[#allocation7 + $0x6] sm:$0x1] %vm40, %v421
    %439 = vst.msk [vmem:[#allocation7 + $0x7] sm:$0x1] %vm40, %v423
    %v440 = vlaneseq
    %v441 = vshrl.u32 %v440, 7
    %v442 = vsub.s32 0, %v441
    %v443 = vrot.slane %v398, %v442
    %v444 = vlaneseq
    %v445 = vshrl.u32 %v444, 7
    %v446 = vsub.s32 0, %v445
    %v447 = vrot.slane %v412, %v446
    %v448 = vlaneseq
    %v449 = vshrl.u32 %v448, 7
    %v450 = vsub.s32 0, %v449
    %v451 = vrot.slane %v420, %v450
    %v452 = vlaneseq
    %v453 = vshrl.u32 %v452, 7
    %v454 = vsub.s32 0, %v453
    %v455 = vrot.slane %v422, %v454
    %v456 = vlaneseq
    %v457 = vshrl.u32 %v456, 7
    %v458 = vsub.s32 0, %v457
    %v459 = vrot.slane %v405, %v458
    %v460 = vlaneseq
    %v461 = vshrl.u32 %v460, 7
    %v462 = vsub.s32 0, %v461
    %v463 = vrot.slane %v419, %v462
    %v464 = vlaneseq
    %v465 = vshrl.u32 %v464, 7
    %v466 = vsub.s32 0, %v465
    %v467 = vrot.slane %v421, %v466
    %v468 = vlaneseq
    %v469 = vshrl.u32 %v468, 7
    %v470 = vsub.s32 0, %v469
    %v471 = vrot.slane %v423, %v470
    %472 = vrot.lane.b32.xlu0 %v443, 112
    %v473 = vpop.permute.xlu0 %472
    %474 = vrot.lane.b32.xlu0 %v447, 112
    %v475 = vpop.permute.xlu0 %474
    %476 = vrot.lane.b32.xlu0 %v451, 112
    %v477 = vpop.permute.xlu0 %476
    %478 = vrot.lane.b32.xlu0 %v455, 112
    %v479 = vpop.permute.xlu0 %478
    %480 = vrot.lane.b32.xlu0 %v459, 112
    %v481 = vpop.permute.xlu0 %480
    %482 = vrot.lane.b32.xlu0 %v463, 112
    %v483 = vpop.permute.xlu0 %482
    %484 = vrot.lane.b32.xlu0 %v467, 112
    %v485 = vpop.permute.xlu0 %484
    %486 = vrot.lane.b32.xlu0 %v471, 112
    %v487 = vpop.permute.xlu0 %486
    %s496 = scalar_lea.vmem [#allocation7], 8
    %497 = vst.msk [vmem:[%s496] sm:$0x1] %vm40, %v473
    %498 = vst.msk [vmem:[%s496 + $0x1] sm:$0x1] %vm40, %v475
    %499 = vst.msk [vmem:[%s496 + $0x2] sm:$0x1] %vm40, %v477
    %500 = vst.msk [vmem:[%s496 + $0x3] sm:$0x1] %vm40, %v479
    %501 = vst.msk [vmem:[%s496 + $0x4] sm:$0x1] %vm40, %v481
    %502 = vst.msk [vmem:[%s496 + $0x5] sm:$0x1] %vm40, %v483
    %503 = vst.msk [vmem:[%s496 + $0x6] sm:$0x1] %vm40, %v485
    %504 = vst.msk [vmem:[%s496 + $0x7] sm:$0x1] %vm40, %v487
    // Predicated region
    $region18: #{stream_conv2d.1} parent=1 // pred_check
      _
    $region19: #{stream_conv2d.1} parent=1 // pred_check_branch
      %506 = sbr.rel (0) target = $region21
    $region20: #{stream_conv2d.1} parent=1 // pred_region
      %s508 = ssub.s32 256, 256
      %509 = vsyncadd [#allocation6], %s508
      %s510 = sshll.u32 [#allocation7], 4
      %s511 = int_to_ptr.vmem [resolvable:$true] %s510
      %516 = dma.vmem_to_hbm [thread:$0]  %s511, 256, %s3, [#allocation6], 16, 16, 1
    $region21: #{stream_conv2d.1} parent=1 // pred_fallthru
      _
    // Predicated region
    $region22: #{stream_conv2d.1} parent=1 // pred_check
      _
    $region23: #{stream_conv2d.1} parent=1 // pred_check_branch
      %518 = sbr.rel (0) target = $region25
    $region24: #{stream_conv2d.1} parent=1 // pred_region
      %s520 = ssub.s32 256, 256
      %521 = vsyncadd [#allocation9], %s520
      %s522 = sshll.u32 [#allocation8], 4
      %s523 = int_to_ptr.vmem [resolvable:$true] %s522
      %528 = dma.vmem_to_hbm [thread:$0]  %s523, 256, %s4, [#allocation9], 32, 32, 2
    $region25: #{stream_conv2d.1} parent=1 // pred_fallthru
      _
    // Predicated region
    $region26: #{stream_conv2d.1} parent=1 // pred_check
      _
    $region27: #{stream_conv2d.1} parent=1 // pred_check_branch
      %530 = sbr.rel (0) target = $region29
    $region28: #{stream_conv2d.1} parent=1 // pred_region
      %531 = dma.done [#allocation6], 256
    $region29: #{stream_conv2d.1} parent=1 // pred_fallthru
      _
    // Predicated region
    $region30: #{stream_conv2d.1} parent=1 // pred_check
      _
    $region31: #{stream_conv2d.1} parent=1 // pred_check_branch
      %533 = sbr.rel (0) target = $region33
    $region32: #{stream_conv2d.1} parent=1 // pred_region
      %534 = dma.done [#allocation9], 256
    $region33: #{stream_conv2d.1} parent=1 // pred_fallthru
      _
    %535 = vsyncpa [#allocation5], 1
    %536 = vsyncpa [#allocation6], 1
    %537 = vsyncpa [#allocation9], 1

</llo_original>
